<compile_context>
chip_gen: v7x
topology: tpu7x:2x2x1
jax: 0.10.0
libtpu: 0.0.40
codegen_flags: <defaults>
</compile_context>

<pallas_src>
import jax
import jax.numpy as jnp
import numpy as np
from jax.experimental import pallas as pl
from jax.experimental.pallas import tpu as pltpu


COUT_PAD = 128   # lane-dense conv output channels
NC_PAD = 128     # lane-dense classifier output


# ----------------------------- Pallas kernel -------------------------------

def fused_conv_bn_relu_gap_fc_kernel(p_ref, w_ref, b_ref, fcw_ref, fcb_ref,
                                     o_ref):
    """One grid step == one image.

    p_ref   : (H*W, 9*Cin)      bf16  im2col patch rows for this image
    w_ref   : (9*Cin, COUT_PAD) bf16  conv weight with BN scale folded in
    b_ref   : (1, COUT_PAD)     f32   folded BN (+conv) bias
    fcw_ref : (COUT_PAD, NC_PAD) bf16 classifier weight (zero-padded)
    fcb_ref : (1, NC_PAD)       f32   classifier bias (zero-padded)
    o_ref   : (8, NC_PAD)       f32   logits broadcast across 8 sublanes
    """
    # Conv as an im2col matmul on the MXU (bf16 operands, f32 accumulation).
    y = jnp.dot(p_ref[...], w_ref[...], preferred_element_type=jnp.float32)
    # Folded BatchNorm bias + ReLU (f32 on the VPU).
    y = jnp.maximum(y + b_ref[...], 0.0)                      # (H*W, COUT_PAD)
    # Global average pool over the spatial rows of this image.
    pooled = jnp.mean(y, axis=0, keepdims=True)               # (1, COUT_PAD)
    # Sublane-broadcast so the FC matmul and the store are (8, 128) dense.
    pooled8 = jnp.broadcast_to(pooled, (8, pooled.shape[1]))  # (8, COUT_PAD)
    logits = jnp.dot(pooled8.astype(jnp.bfloat16), fcw_ref[...],
                     preferred_element_type=jnp.float32) + fcb_ref[...]
    o_ref[...] = logits.astype(o_ref.dtype)                   # (8, NC_PAD)


# ------------------------------ host wrapper --------------------------------

def im2col_3x3_same(x_nhwc):
    """3x3 same-padded patches: (N,H,W,C) -> (N*H*W, 9*C), column order (kh,kw,c)."""
    n, h, w, c = x_nhwc.shape
    xp = jnp.pad(x_nhwc, ((0, 0), (1, 1), (1, 1), (0, 0)))
    cols = []
    for kh in range(3):
        for kw in range(3):
            cols.append(xp[:, kh:kh + h, kw:kw + w, :])        # (N,H,W,C)
    patches = jnp.concatenate(cols, axis=-1)                   # (N,H,W,9C)
    return patches.reshape(n * h * w, 9 * c)


@jax.jit
def timm_model_forward(x_nchw, params):
    """Forward pass. x_nchw: (N, Cin, H, W) float32 -> logits (N, num_classes)."""
    n, cin, h, w = x_nchw.shape
    cout = params["conv_w"].shape[0]
    num_classes = params["fc_w"].shape[0]
    hw = h * w
    kkc = 9 * cin

    # NCHW -> NHWC (TPU-friendly), im2col, bf16 for the MXU operand.
    x_nhwc = jnp.transpose(x_nchw, (0, 2, 3, 1))
    patches = im2col_3x3_same(x_nhwc).astype(jnp.bfloat16)     # (N*H*W, 9*Cin)

    # Fold BatchNorm (inference) + conv bias:  y = patches @ (W*scale) + bias
    eps = 1e-5
    scale = params["bn_gamma"] / jnp.sqrt(params["bn_var"] + eps)          # (Cout,)
    bias = params["bn_beta"] + (params["conv_b"] - params["bn_mean"]) * scale

    # Conv weight (Cout, Cin, 3, 3) -> (kh, kw, cin, cout) -> (9*Cin, Cout),
    # scale folded in, padded lane-dense to COUT_PAD, cast to bf16.
    w_col = jnp.transpose(params["conv_w"], (2, 3, 1, 0)).reshape(kkc, cout)
    w_col = w_col * scale[None, :]
    w_col_p = (jnp.zeros((kkc, COUT_PAD), jnp.float32)
               .at[:, :cout].set(w_col).astype(jnp.bfloat16))
    bias_p = jnp.zeros((1, COUT_PAD), jnp.float32).at[:, :cout].set(bias[None, :])

    # Classifier weights, padded lane-dense to (COUT_PAD, NC_PAD).
    fc_w = jnp.transpose(params["fc_w"])                        # (Cout, classes)
    fcw_p = (jnp.zeros((COUT_PAD, NC_PAD), jnp.float32)
             .at[:cout, :num_classes].set(fc_w).astype(jnp.bfloat16))
    fcb_p = (jnp.zeros((1, NC_PAD), jnp.float32)
             .at[:, :num_classes].set(params["fc_b"][None, :]))

    out_pad = pl.pallas_call(
        fused_conv_bn_relu_gap_fc_kernel,
        out_shape=jax.ShapeDtypeStruct((n, 8, NC_PAD), jnp.float32),
        grid_spec=pltpu.PrefetchScalarGridSpec(
            num_scalar_prefetch=0,
            grid=(n,),
            in_specs=[
                pl.BlockSpec((hw, kkc), lambda b: (b, 0)),          # patches of image b
                pl.BlockSpec((kkc, COUT_PAD), lambda b: (0, 0)),    # conv weight
                pl.BlockSpec((1, COUT_PAD), lambda b: (0, 0)),      # folded bias
                pl.BlockSpec((COUT_PAD, NC_PAD), lambda b: (0, 0)), # fc weight
                pl.BlockSpec((1, NC_PAD), lambda b: (0, 0)),        # fc bias
            ],
            out_specs=pl.BlockSpec((None, 8, NC_PAD), lambda b: (b, 0, 0)),
        ),
        compiler_params=pltpu.CompilerParams(
            dimension_semantics=("parallel",)),
    )(patches, w_col_p, bias_p, fcw_p, fcb_p)

    # Drop the sublane broadcast and the channel/class padding.
    return out_pad[:, 0, :num_classes]


# --------------------------- pure-JAX reference -----------------------------

def reference_forward(x_nchw, params):
    eps = 1e-5
    y = jax.lax.conv_general_dilated(
        x_nchw, params["conv_w"], window_strides=(1, 1), padding="SAME",
        dimension_numbers=("NCHW", "OIHW", "NCHW"))
    y = y + params["conv_b"][None, :, None, None]
    scale = params["bn_gamma"] / jnp.sqrt(params["bn_var"] + eps)
    y = (y - params["bn_mean"][None, :, None, None]) * scale[None, :, None, None] \
        + params["bn_beta"][None, :, None, None]
    y = jnp.maximum(y, 0.0)
    pooled = jnp.mean(y, axis=(2, 3))                            # (N, Cout)
    return pooled @ params["fc_w"].T + params["fc_b"]


# ---------------------------------- main ------------------------------------

if __name__ == "__main__":
    # TODO(synk): timm.create_model(model_name, pretrained=...) selects an
    # arbitrary architecture / loads pretrained weights; that has no in-script
    # equivalent, so a representative conv-bn-relu-gap-fc classifier with
    # deterministic synthetic weights is used instead.
    key = jax.random.PRNGKey(0)
    k_x, k_cw, k_cb, k_g, k_b, k_m, k_v, k_fw, k_fb = jax.random.split(key, 9)

    N, CIN, H, W = 2, 4, 16, 16
    COUT, NUM_CLASSES = 32, 10

    x = jax.random.normal(k_x, (N, CIN, H, W), dtype=jnp.float32)

    params = {
        "conv_w": 0.1 * jax.random.normal(k_cw, (COUT, CIN, 3, 3), jnp.float32),
        "conv_b": 0.1 * jax.random.normal(k_cb, (COUT,), jnp.float32),
        "bn_gamma": 1.0 + 0.05 * jax.random.normal(k_g, (COUT,), jnp.float32),
        "bn_beta": 0.05 * jax.random.normal(k_b, (COUT,), jnp.float32),
        "bn_mean": 0.05 * jax.random.normal(k_m, (COUT,), jnp.float32),
        "bn_var": jnp.abs(1.0 + 0.05 * jax.random.normal(k_v, (COUT,), jnp.float32)),
        "fc_w": 0.1 * jax.random.normal(k_fw, (NUM_CLASSES, COUT), jnp.float32),
        "fc_b": 0.1 * jax.random.normal(k_fb, (NUM_CLASSES,), jnp.float32),
    }

    logits = jax.block_until_ready(timm_model_forward(x, params))
    ref = jax.block_until_ready(reference_forward(x, params))

    assert logits.shape == (N, NUM_CLASSES)
    assert np.allclose(np.asarray(logits), np.asarray(ref), rtol=2e-2, atol=2e-2)

    print("KERNEL_OK")
</pallas_src>

<mosaic_0001>
module attributes {stable_mosaic.version = 11 : i64} {
  func.func @fused_conv_bn_relu_gap_fc_kernel(%arg0: i32, %arg1: memref<256x36xbf16, #tpu.memory_space<vmem>>, %arg2: memref<36x128xbf16, #tpu.memory_space<vmem>>, %arg3: memref<1x128xf32, #tpu.memory_space<vmem>>, %arg4: memref<128x128xbf16, #tpu.memory_space<vmem>>, %arg5: memref<1x128xf32, #tpu.memory_space<vmem>>, %arg6: memref<1x8x128xf32, #tpu.memory_space<vmem>>) attributes {dimension_semantics = [#tpu.dimension_semantics<parallel>], iteration_bounds = array<i64: 2>, scalar_prefetch = 0 : i64, scratch_operands = 0 : i64, tpu.core_type = #tpu.core_type<tc>, window_params = [{transform_indices = @transform_0, window_bounds = array<i64: 256, 36>}, {pipeline_mode = #tpu.pipeline_mode<synchronous>, transform_indices = @transform_1, window_bounds = array<i64: 36, 128>}, {pipeline_mode = #tpu.pipeline_mode<synchronous>, transform_indices = @transform_2, window_bounds = array<i64: 1, 128>}, {pipeline_mode = #tpu.pipeline_mode<synchronous>, transform_indices = @transform_3, window_bounds = array<i64: 128, 128>}, {pipeline_mode = #tpu.pipeline_mode<synchronous>, transform_indices = @transform_4, window_bounds = array<i64: 1, 128>}, {transform_indices = @transform_5, window_bounds = array<i64: 1, 8, 128>}]} {
    %c0 = arith.constant 0 : index
    %c0_0 = arith.constant 0 : index
    %0 = vector.load %arg1[%c0, %c0_0] : memref<256x36xbf16, #tpu.memory_space<vmem>>, vector<256x36xbf16>
    %c0_1 = arith.constant 0 : index
    %c0_2 = arith.constant 0 : index
    %1 = vector.load %arg2[%c0_1, %c0_2] : memref<36x128xbf16, #tpu.memory_space<vmem>>, vector<36x128xbf16>
    %cst = arith.constant dense<0.000000e+00> : vector<256x128xf32>
    %2 = tpu.matmul %0, %1, %cst {dimension_numbers = #tpu.dot_dimension_numbers<[1], [0], [0], [1], [0, 0, 1, 1], [], []>} : vector<256x36xbf16>, vector<36x128xbf16>, vector<256x128xf32> -> vector<256x128xf32>
    %c0_3 = arith.constant 0 : index
    %c0_4 = arith.constant 0 : index
    %3 = vector.load %arg3[%c0_3, %c0_4] : memref<1x128xf32, #tpu.memory_space<vmem>>, vector<1x128xf32>
    %4 = vector.broadcast %3 : vector<1x128xf32> to vector<256x128xf32>
    %5 = arith.addf %2, %4 : vector<256x128xf32>
    %cst_5 = arith.constant 0.000000e+00 : f32
    %6 = vector.broadcast %cst_5 : f32 to vector<256x128xf32>
    %7 = arith.maximumf %5, %6 : vector<256x128xf32>
    %cst_6 = arith.constant dense<0.000000e+00> : vector<128xf32>
    %8 = vector.multi_reduction <add>, %7, %cst_6 [0] : vector<256x128xf32> to vector<128xf32>
    %9 = vector.shape_cast %8 : vector<128xf32> to vector<1x128xf32>
    %cst_7 = arith.constant 2.560000e+02 : f32
    %10 = vector.broadcast %cst_7 : f32 to vector<1x128xf32>
    %11 = arith.divf %9, %10 : vector<1x128xf32>
    %12 = vector.shape_cast %11 : vector<1x128xf32> to vector<1x128xf32>
    %13 = vector.broadcast %12 : vector<1x128xf32> to vector<8x128xf32>
    %14 = arith.truncf %13 : vector<8x128xf32> to vector<8x128xbf16>
    %c0_8 = arith.constant 0 : index
    %c0_9 = arith.constant 0 : index
    %15 = vector.load %arg4[%c0_8, %c0_9] : memref<128x128xbf16, #tpu.memory_space<vmem>>, vector<128x128xbf16>
    %cst_10 = arith.constant dense<0.000000e+00> : vector<8x128xf32>
    %16 = tpu.matmul %14, %15, %cst_10 {dimension_numbers = #tpu.dot_dimension_numbers<[1], [0], [0], [1], [0, 0, 1, 1], [], []>} : vector<8x128xbf16>, vector<128x128xbf16>, vector<8x128xf32> -> vector<8x128xf32>
    %c0_11 = arith.constant 0 : index
    %c0_12 = arith.constant 0 : index
    %17 = vector.load %arg5[%c0_11, %c0_12] : memref<1x128xf32, #tpu.memory_space<vmem>>, vector<1x128xf32>
    %18 = vector.broadcast %17 : vector<1x128xf32> to vector<8x128xf32>
    %19 = arith.addf %16, %18 : vector<8x128xf32>
    %c0_13 = arith.constant 0 : index
    %c0_14 = arith.constant 0 : index
    %c0_15 = arith.constant 0 : index
    %20 = vector.load %arg6[%c0_13, %c0_14, %c0_15] : memref<1x8x128xf32, #tpu.memory_space<vmem>>, vector<1x8x128xf32>
    %21 = vector.shape_cast %20 : vector<1x8x128xf32> to vector<8x128xf32>
    %22 = vector.shape_cast %19 : vector<8x128xf32> to vector<1x8x128xf32>
    tpu.vector_store %arg6[%c0_13, %c0_14, %c0_15], %22 {strides = array<i32>} : memref<1x8x128xf32, #tpu.memory_space<vmem>>, vector<1x8x128xf32>,
    return
  }
  func.func @transform_0(%arg0: i32) -> (i32, i32) {
    %c0_i32 = arith.constant 0 : i32
    %c0_i32_0 = arith.constant 0 : i32
    return %arg0, %c0_i32 : i32, i32
  }
  func.func @transform_1(%arg0: i32) -> (i32, i32) {
    %c0_i32 = arith.constant 0 : i32
    %c0_i32_0 = arith.constant 0 : i32
    %c0_i32_1 = arith.constant 0 : i32
    return %c0_i32, %c0_i32_0 : i32, i32
  }
  func.func @transform_2(%arg0: i32) -> (i32, i32) {
    %c0_i32 = arith.constant 0 : i32
    %c0_i32_0 = arith.constant 0 : i32
    %c0_i32_1 = arith.constant 0 : i32
    return %c0_i32, %c0_i32_0 : i32, i32
  }
  func.func @transform_3(%arg0: i32) -> (i32, i32) {
    %c0_i32 = arith.constant 0 : i32
    %c0_i32_0 = arith.constant 0 : i32
    %c0_i32_1 = arith.constant 0 : i32
    return %c0_i32, %c0_i32_0 : i32, i32
  }
  func.func @transform_4(%arg0: i32) -> (i32, i32) {
    %c0_i32 = arith.constant 0 : i32
    %c0_i32_0 = arith.constant 0 : i32
    %c0_i32_1 = arith.constant 0 : i32
    return %c0_i32, %c0_i32_0 : i32, i32
  }
  func.func @transform_5(%arg0: i32) -> (i32, i32, i32) {
    %c0_i32 = arith.constant 0 : i32
    %c0_i32_0 = arith.constant 0 : i32
    %c0_i32_1 = arith.constant 0 : i32
    return %arg0, %c0_i32, %c0_i32_0 : i32, i32, i32
  }
}

</mosaic_0001>

<llo_original>
// kernel: timm_model_forward.1
$region0: #{timm_model_forward.1}
  #allocation0 [shape = 'u32[]', space=smem, size = 0x4, offset = 0x4, fixed_abs, tag = 'smem constant byte address 0x4 - core index']
  #allocation1 [shape = 'u32[144,128]{1,0:T(1,128)}', space=vmem, size = 0x12000, scoped, tag = 'internal scratch']
  %s0 = inlined_call_operand.vmem [shape: bf16[512,36], index: 0, kind: input, shape index: {}]
  %s1 = inlined_call_operand.vmem [shape: bf16[36,128], index: 1, kind: input, shape index: {}]
  %s2 = inlined_call_operand.vmem [shape: f32[1,128], index: 2, kind: input, shape index: {}]
  %s3 = inlined_call_operand.vmem [shape: bf16[128,128], index: 3, kind: input, shape index: {}]
  %s4 = inlined_call_operand.vmem [shape: f32[1,128], index: 4, kind: input, shape index: {}]
  %s5 = inlined_call_operand.vmem [shape: f32[2,8,128], index: 5, kind: output, shape index: {}]
  %s6 = sld [smem:[#allocation0]]
  $region53: #{timm_model_forward.1} parent=0
    _
  %s8 = ssub.s32 1, %s6
  %s9 = scalar_select 0, %s8, %s6
  loop: start=0, step=1, limit=4
  $region2: #{timm_model_forward.1} parent=0 // loop_pre_header
    _
  $region3: #{timm_model_forward.1} parent=0 // loop_header
    %s11 = sphi 0, %s15
    %p12 = scmp.ge.s32.totalorder %s11, 4
    %s21 = sphi 0, %s23
    %s24 = sphi 0, %s21
    %s25 = sphi 0, %s24
    %s41 = sphi 0, %s25
    %s45 = sphi 0, %s45
    %s47 = sphi 0, %s45
    %s48 = sphi 0, %s47
    %s62 = sphi 0, %s48
    %s66 = sphi 0, %s66
    %s68 = sphi 0, %s66
    %s69 = sphi 0, %s68
    %s83 = sphi 0, %s69
    %s87 = sphi 0, %s87
    %s89 = sphi 0, %s87
    %s90 = sphi 0, %s89
    %s104 = sphi 0, %s90
    %s108 = sphi 0, %s108
    %s110 = sphi 0, %s108
    %s111 = sphi 0, %s110
    %s125 = sphi 0, %s111
    %s131 = sphi 0, %s133
    %s134 = sphi 0, %s131
    %s135 = sphi 0, %s134
    %s151 = sphi 0, %s135
  $region4: #{timm_model_forward.1} parent=0 // loop_header_branch
    %14 = sbr.rel (%p12) target = $region8
  $region5: #{timm_model_forward.1} parent=0 // loop_body
    %s16 = ssub.s32 %s11, 1
    %s17 = ssub.s32 %s11, 2
    %s18 = sadd.s32 %s11, 1
    %s19 = ssub.s32 %s11, %s18
    %p20 = scmp.eq.s32.totalorder %s19, 0
    %s22 = sadd.s32 %s21, 1
    %s23 = scalar_select %p20, %s21, %s22
    %p26 = pneg %p20
    %p27 = scmp.eq.s32.totalorder %s11, 1
    %p28 = por %p26, %p27
    %p29 = scmp.ne.s32.totalorder %s21, %s24
    %p30 = scmp.eq.s32.totalorder %s11, 0
    %p31 = por %p29, %p30
    %p32 = scmp.ne.s32.totalorder %s21, %s24
    %p33 = scmp.eq.s32.totalorder %s16, 1
    %p34 = por %p32, %p33
    %p35 = scmp.ne.s32.totalorder %s24, %s25
    %p36 = scmp.eq.s32.totalorder %s16, 0
    %p37 = por %p35, %p36
    %p38 = scmp.ne.s32.totalorder %s24, %s25
    %p39 = scmp.eq.s32.totalorder %s17, 1
    %p40 = por %p38, %p39
    %p42 = scmp.ne.s32.totalorder %s25, %s41
    %p43 = scmp.eq.s32.totalorder %s17, 0
    %p44 = por %p42, %p43
    %s46 = sadd.s32 %s45, 1
    %p49 = scmp.eq.s32.totalorder %s11, 1
    %p50 = scmp.ne.s32.totalorder %s45, %s47
    %p51 = scmp.eq.s32.totalorder %s11, 0
    %p52 = por %p50, %p51
    %p53 = scmp.ne.s32.totalorder %s45, %s47
    %p54 = scmp.eq.s32.totalorder %s16, 1
    %p55 = por %p53, %p54
    %p56 = scmp.ne.s32.totalorder %s47, %s48
    %p57 = scmp.eq.s32.totalorder %s16, 0
    %p58 = por %p56, %p57
    %p59 = scmp.ne.s32.totalorder %s47, %s48
    %p60 = scmp.eq.s32.totalorder %s17, 1
    %p61 = por %p59, %p60
    %p63 = scmp.ne.s32.totalorder %s48, %s62
    %p64 = scmp.eq.s32.totalorder %s17, 0
    %p65 = por %p63, %p64
    %s67 = sadd.s32 %s66, 1
    %p70 = scmp.eq.s32.totalorder %s11, 1
    %p71 = scmp.ne.s32.totalorder %s66, %s68
    %p72 = scmp.eq.s32.totalorder %s11, 0
    %p73 = por %p71, %p72
    %p74 = scmp.ne.s32.totalorder %s66, %s68
    %p75 = scmp.eq.s32.totalorder %s16, 1
    %p76 = por %p74, %p75
    %p77 = scmp.ne.s32.totalorder %s68, %s69
    %p78 = scmp.eq.s32.totalorder %s16, 0
    %p79 = por %p77, %p78
    %p80 = scmp.ne.s32.totalorder %s68, %s69
    %p81 = scmp.eq.s32.totalorder %s17, 1
    %p82 = por %p80, %p81
    %p84 = scmp.ne.s32.totalorder %s69, %s83
    %p85 = scmp.eq.s32.totalorder %s17, 0
    %p86 = por %p84, %p85
    %s88 = sadd.s32 %s87, 1
    %p91 = scmp.eq.s32.totalorder %s11, 1
    %p92 = scmp.ne.s32.totalorder %s87, %s89
    %p93 = scmp.eq.s32.totalorder %s11, 0
    %p94 = por %p92, %p93
    %p95 = scmp.ne.s32.totalorder %s87, %s89
    %p96 = scmp.eq.s32.totalorder %s16, 1
    %p97 = por %p95, %p96
    %p98 = scmp.ne.s32.totalorder %s89, %s90
    %p99 = scmp.eq.s32.totalorder %s16, 0
    %p100 = por %p98, %p99
    %p101 = scmp.ne.s32.totalorder %s89, %s90
    %p102 = scmp.eq.s32.totalorder %s17, 1
    %p103 = por %p101, %p102
    %p105 = scmp.ne.s32.totalorder %s90, %s104
    %p106 = scmp.eq.s32.totalorder %s17, 0
    %p107 = por %p105, %p106
    %s109 = sadd.s32 %s108, 1
    %p112 = scmp.eq.s32.totalorder %s11, 1
    %p113 = scmp.ne.s32.totalorder %s108, %s110
    %p114 = scmp.eq.s32.totalorder %s11, 0
    %p115 = por %p113, %p114
    %p116 = scmp.ne.s32.totalorder %s108, %s110
    %p117 = scmp.eq.s32.totalorder %s16, 1
    %p118 = por %p116, %p117
    %p119 = scmp.ne.s32.totalorder %s110, %s111
    %p120 = scmp.eq.s32.totalorder %s16, 0
    %p121 = por %p119, %p120
    %p122 = scmp.ne.s32.totalorder %s110, %s111
    %p123 = scmp.eq.s32.totalorder %s17, 1
    %p124 = por %p122, %p123
    %p126 = scmp.ne.s32.totalorder %s111, %s125
    %p127 = scmp.eq.s32.totalorder %s17, 0
    %p128 = por %p126, %p127
    %s129 = ssub.s32 %s11, %s18
    %p130 = scmp.eq.s32.totalorder %s129, 0
    %s132 = sadd.s32 %s131, 1
    %s133 = scalar_select %p130, %s131, %s132
    %p136 = pneg %p130
    %p137 = scmp.eq.s32.totalorder %s11, 1
    %p138 = por %p136, %p137
    %p139 = scmp.ne.s32.totalorder %s131, %s134
    %p140 = scmp.eq.s32.totalorder %s11, 0
    %p141 = por %p139, %p140
    %p142 = scmp.ne.s32.totalorder %s131, %s134
    %p143 = scmp.eq.s32.totalorder %s16, 1
    %p144 = por %p142, %p143
    %p145 = scmp.ne.s32.totalorder %s134, %s135
    %p146 = scmp.eq.s32.totalorder %s16, 0
    %p147 = por %p145, %p146
    %p148 = scmp.ne.s32.totalorder %s134, %s135
    %p149 = scmp.eq.s32.totalorder %s17, 1
    %p150 = por %p148, %p149
    %p152 = scmp.ne.s32.totalorder %s135, %s151
    %p153 = scmp.eq.s32.totalorder %s17, 0
    %p154 = por %p152, %p153
    %p155 = scmp.le.s32.totalorder 1, %s11
    %p156 = scmp.lt.s32.totalorder %s11, 3
    %p157 = pnand %p155, %p156
    %p158 = pneg %p157
    // Predicated region
    $region9: #{timm_model_forward.1} parent=5 // pred_check
      _
    $region10: #{timm_model_forward.1} parent=5 // pred_check_branch
      %160 = sbr.rel (%p157) target = $region12
    $region11: #{timm_model_forward.1} parent=5 // pred_region
      %s161 = ssub.s32 %s11, 1
      // Predicated region
      $region13: #{timm_model_forward.1} parent=11 // pred_check
        %p162 = pneg %p58
      $region14: #{timm_model_forward.1} parent=11 // pred_check_branch
        %164 = sbr.rel (%p162) target = $region16
      $region15: #{timm_model_forward.1} parent=11 // pred_region
        _
      $region16: #{timm_model_forward.1} parent=11 // pred_fallthru
        _
      // Predicated region
      $region17: #{timm_model_forward.1} parent=11 // pred_check
        %p165 = pneg %p79
      $region18: #{timm_model_forward.1} parent=11 // pred_check_branch
        %167 = sbr.rel (%p165) target = $region20
      $region19: #{timm_model_forward.1} parent=11 // pred_region
        _
      $region20: #{timm_model_forward.1} parent=11 // pred_fallthru
        _
      // Predicated region
      $region21: #{timm_model_forward.1} parent=11 // pred_check
        %p168 = pneg %p100
      $region22: #{timm_model_forward.1} parent=11 // pred_check_branch
        %170 = sbr.rel (%p168) target = $region24
      $region23: #{timm_model_forward.1} parent=11 // pred_region
        _
      $region24: #{timm_model_forward.1} parent=11 // pred_fallthru
        _
      // Predicated region
      $region25: #{timm_model_forward.1} parent=11 // pred_check
        %p171 = pneg %p121
      $region26: #{timm_model_forward.1} parent=11 // pred_check_branch
        %173 = sbr.rel (%p171) target = $region28
      $region27: #{timm_model_forward.1} parent=11 // pred_region
        _
      $region28: #{timm_model_forward.1} parent=11 // pred_fallthru
        _
    $region12: #{timm_model_forward.1} parent=5 // pred_fallthru
      _
    %p174 = scmp.lt.s32.totalorder %s11, 2
    // Predicated region
    $region29: #{timm_model_forward.1} parent=5 // pred_check
      %p175 = pneg %p174
    $region30: #{timm_model_forward.1} parent=5 // pred_check_branch
      %177 = sbr.rel (%p175) target = $region32
    $region31: #{timm_model_forward.1} parent=5 // pred_region
      // Predicated region
      $region33: #{timm_model_forward.1} parent=31 // pred_check
        %p178 = pneg %p31
      $region34: #{timm_model_forward.1} parent=31 // pred_check_branch
        %180 = sbr.rel (%p178) target = $region36
      $region35: #{timm_model_forward.1} parent=31 // pred_region
        %s181 = smul.u32 32, %s11
        %p182 = scmp.lt.s32.totalorder %s181, 63
        %s183 = scalar_select %p182, %s181, 63
        %s184 = smul.addr %s183, 4
        %s185 = scalar_lea.vmem %s0, %s184
        %s186 = smul.u32 32, %s11
      $region36: #{timm_model_forward.1} parent=31 // pred_fallthru
        _
    $region32: #{timm_model_forward.1} parent=5 // pred_fallthru
      _
    %p187 = scmp.le.s32.totalorder 1, %s11
    %p188 = scmp.lt.s32.totalorder %s11, 3
    %p189 = pnand %p187, %p188
    %p190 = pneg %p189
    // Predicated region
    $region37: #{timm_model_forward.1} parent=5 // pred_check
      _
    $region38: #{timm_model_forward.1} parent=5 // pred_check_branch
      %192 = sbr.rel (%p189) target = $region40
    $region39: #{timm_model_forward.1} parent=5 // pred_region
      %s193 = ssub.s32 %s11, 1
      %s194 = smul.u32 32, %s16
      %p195 = scmp.lt.s32.totalorder %s194, 63
      %s196 = scalar_select %p195, %s194, 63
      %s197 = smul.addr %s196, 4
      %s198 = scalar_lea.vmem %s0, %s197
      %p199 = pneg %p37
      %p200 = pneg %p34
      %p201 = pneg %p58
      %p202 = pneg %p55
      %p203 = pneg %p79
      %p204 = pneg %p76
      %p205 = pneg %p100
      %p206 = pneg %p97
      %p207 = pneg %p121
      %p208 = pneg %p118
      %p209 = pneg %p147
      %p210 = pneg %p144
      %p211 = scmp.lt.s32.totalorder %s16, 1
      %s212 = scalar_select %p211, %s16, 1
      %s213 = smul.addr %s212, 8
      %s214 = scalar_lea.vmem %s5, %s213
      %s215 = smul.u32 32, %s16
      %p216 = scmp.lt.s32.totalorder %s215, 63
      %s217 = scalar_select %p216, %s215, 63
      %s218 = smul.addr %s217, 4
      %s219 = scalar_lea.vmem %s0, %s218
      %s220 = smul.u32 32, %s16
      %p221 = scmp.lt.s32.totalorder %s16, 1
      %s222 = scalar_select %p221, %s16, 1
      %s223 = smul.addr %s222, 8
      %s224 = scalar_lea.vmem %s5, %s223
      %v226 = vld [vmem:[%s219] sm:$0xf]
      %v227 = vld [vmem:[%s219 + $0x4] sm:$0xf]
      %v228 = vld [vmem:[%s219 + $0x8] sm:$0xf]
      %v229 = vld [vmem:[%s219 + $0xc] sm:$0xf]
      %v230 = vld [vmem:[%s219 + $0x10] sm:$0xf]
      %v231 = vld [vmem:[%s219 + $0x14] sm:$0xf]
      %v232 = vld [vmem:[%s219 + $0x18] sm:$0xf]
      %v233 = vld [vmem:[%s219 + $0x1c] sm:$0xf]
      %v234 = vld [vmem:[%s219 + $0x20] sm:$0xf]
      %v235 = vld [vmem:[%s219 + $0x24] sm:$0xf]
      %v236 = vld [vmem:[%s219 + $0x28] sm:$0xf]
      %v237 = vld [vmem:[%s219 + $0x2c] sm:$0xf]
      %v238 = vld [vmem:[%s219 + $0x30] sm:$0xf]
      %v239 = vld [vmem:[%s219 + $0x34] sm:$0xf]
      %v240 = vld [vmem:[%s219 + $0x38] sm:$0xf]
      %v241 = vld [vmem:[%s219 + $0x3c] sm:$0xf]
      %v242 = vld [vmem:[%s219 + $0x40] sm:$0xf]
      %v243 = vld [vmem:[%s219 + $0x44] sm:$0xf]
      %v244 = vld [vmem:[%s219 + $0x48] sm:$0xf]
      %v245 = vld [vmem:[%s219 + $0x4c] sm:$0xf]
      %v246 = vld [vmem:[%s219 + $0x50] sm:$0xf]
      %v247 = vld [vmem:[%s219 + $0x54] sm:$0xf]
      %v248 = vld [vmem:[%s219 + $0x58] sm:$0xf]
      %v249 = vld [vmem:[%s219 + $0x5c] sm:$0xf]
      %v250 = vld [vmem:[%s219 + $0x60] sm:$0xf]
      %v251 = vld [vmem:[%s219 + $0x64] sm:$0xf]
      %v252 = vld [vmem:[%s219 + $0x68] sm:$0xf]
      %v253 = vld [vmem:[%s219 + $0x6c] sm:$0xf]
      %v254 = vld [vmem:[%s219 + $0x70] sm:$0xf]
      %v255 = vld [vmem:[%s219 + $0x74] sm:$0xf]
      %v256 = vld [vmem:[%s219 + $0x78] sm:$0xf]
      %v257 = vld [vmem:[%s219 + $0x7c] sm:$0xf]
      %v258 = vld [vmem:[%s1] sm:$0xf]
      %v259 = vld [vmem:[%s1 + $0x4] sm:$0xf]
      %v260 = vld [vmem:[%s1 + $0x8] sm:$0xf]
      %v261 = vld [vmem:[%s1 + $0xc] sm:$0xf]
      %v262 = vld [vmem:[%s1 + $0x10] sm:$0x3]
      %v263 = vld [vmem:[%s2] sm:$0x1]
      %v265 = vlaneseq
      %v266 = vshrl.u32 %v265, 7
      %v267 = vsub.s32 0, %v266
      %v268 = vrot.slane %v263, %v267
      %v302 = vunpack.c.l.b16 %v226
      %v303 = vunpack.c.l.b16 %v227
      %v304 = vunpack.c.l.b16 %v228
      %v305 = vunpack.c.l.b16 %v229
      %v306 = vunpack.c.l.b16 %v230
      %v307 = vunpack.c.l.b16 %v231
      %v308 = vunpack.c.l.b16 %v232
      %v309 = vunpack.c.l.b16 %v233
      %v310 = vunpack.c.l.b16 %v234
      %v311 = vunpack.c.l.b16 %v235
      %v312 = vunpack.c.l.b16 %v236
      %v313 = vunpack.c.l.b16 %v237
      %v314 = vunpack.c.l.b16 %v238
      %v315 = vunpack.c.l.b16 %v239
      %v316 = vunpack.c.l.b16 %v240
      %v317 = vunpack.c.l.b16 %v241
      %v318 = vunpack.c.l.b16 %v242
      %v319 = vunpack.c.l.b16 %v243
      %v320 = vunpack.c.l.b16 %v244
      %v321 = vunpack.c.l.b16 %v245
      %v322 = vunpack.c.l.b16 %v246
      %v323 = vunpack.c.l.b16 %v247
      %v324 = vunpack.c.l.b16 %v248
      %v325 = vunpack.c.l.b16 %v249
      %v326 = vunpack.c.l.b16 %v250
      %v327 = vunpack.c.l.b16 %v251
      %v328 = vunpack.c.l.b16 %v252
      %v329 = vunpack.c.l.b16 %v253
      %v330 = vunpack.c.l.b16 %v254
      %v331 = vunpack.c.l.b16 %v255
      %v332 = vunpack.c.l.b16 %v256
      %v333 = vunpack.c.l.b16 %v257
      %v334 = vpack.c.b16 %v303, %v302
      %v335 = vpack.c.b16 %v305, %v304
      %v336 = vpack.c.b16 %v307, %v306
      %v337 = vpack.c.b16 %v309, %v308
      %v338 = vpack.c.b16 %v311, %v310
      %v339 = vpack.c.b16 %v313, %v312
      %v340 = vpack.c.b16 %v315, %v314
      %v341 = vpack.c.b16 %v317, %v316
      %v342 = vpack.c.b16 %v319, %v318
      %v343 = vpack.c.b16 %v321, %v320
      %v344 = vpack.c.b16 %v323, %v322
      %v345 = vpack.c.b16 %v325, %v324
      %v346 = vpack.c.b16 %v327, %v326
      %v347 = vpack.c.b16 %v329, %v328
      %v348 = vpack.c.b16 %v331, %v330
      %v349 = vpack.c.b16 %v333, %v332
      %v355 = vunpack.c.l.b16 %v258
      %v356 = vunpack.c.l.b16 %v259
      %v357 = vunpack.c.l.b16 %v260
      %v358 = vunpack.c.l.b16 %v261
      %v359 = vunpack.c.l.b16 %v262
      %v360 = vpack.c.b16 %v356, %v355
      %v361 = vpack.c.b16 %v358, %v357
      %v362 = vpack.c.b16 %v359, %v359
      %vm365 = vcmask 293888
      %v367 = vsel %vm365, %v334, 0
      %v370 = vsel %vm365, %v335, 0
      %v373 = vsel %vm365, %v336, 0
      %v376 = vsel %vm365, %v337, 0
      %v379 = vsel %vm365, %v338, 0
      %v382 = vsel %vm365, %v339, 0
      %v385 = vsel %vm365, %v340, 0
      %v388 = vsel %vm365, %v341, 0
      %v391 = vsel %vm365, %v342, 0
      %v394 = vsel %vm365, %v343, 0
      %v397 = vsel %vm365, %v344, 0
      %v400 = vsel %vm365, %v345, 0
      %v403 = vsel %vm365, %v346, 0
      %v406 = vsel %vm365, %v347, 0
      %v409 = vsel %vm365, %v348, 0
      %v412 = vsel %vm365, %v349, 0
      %vm414 = vcmask 1041408
      %v416 = vsel %vm414, %v362, 0
      %418 = vmatprep.subr.bf16.mxu0 0
      %419 = vmatpush1.bf16.msra.mxu0 %v360
      %420 = vmatprep.subr.bf16.mxu0 0
      %421 = vmatpush1.bf16.msra.mxu0 %v361
      %422 = vmatprep.subr.bf16.mxu0 0
      %423 = vmatpush1.bf16.msra.mxu0 %v416
      %424 = vmatprep.subr.bf16.mxu0 0
      %425 = vmatpush1.bf16.msra.mxu0 0
      %426 = vmatprep.subr.bf16.mxu0 0
      %427 = vmatpush1.bf16.msra.mxu0 0
      %428 = vmatprep.subr.bf16.mxu0 0
      %429 = vmatpush1.bf16.msra.mxu0 0
      %430 = vmatprep.subr.bf16.mxu0 0
      %431 = vmatpush1.bf16.msra.mxu0 0
      %432 = vmatprep.subr.bf16.mxu0 0
      %433 = vmatpush1.bf16.msra.mxu0 0
      %434 = vmatprep.subr.bf16.mxu0 0
      %435 = vmatpush1.bf16.msra.mxu0 0
      %436 = vmatprep.subr.bf16.mxu0 0
      %437 = vmatpush1.bf16.msra.mxu0 0
      %438 = vmatprep.subr.bf16.mxu0 0
      %439 = vmatpush1.bf16.msra.mxu0 0
      %440 = vmatprep.subr.bf16.mxu0 0
      %441 = vmatpush1.bf16.msra.mxu0 0
      %442 = vmatprep.subr.bf16.mxu0 0
      %443 = vmatpush1.bf16.msra.mxu0 0
      %444 = vmatprep.subr.bf16.mxu0 0
      %445 = vmatpush1.bf16.msra.mxu0 0
      %446 = vmatprep.subr.bf16.mxu0 0
      %447 = vmatpush1.bf16.msra.mxu0 0
      %448 = vmatprep.subr.bf16.mxu0 0
      %449 = vmatpush1.bf16.msra.mxu0 0
      %450 = vmatprep.mubr.bf16.mxu0 0
      %451 = vmatmul.mubr.bf16.gmra.mrb[0].mxu0 %v367
      %v452 = vpop.f32.mrb[0].mxu0
      %v453 = vadd.f32 %v268, %v452
      %v454 = vpop.f32.mrb[0].mxu0
      %v455 = vpop.f32.mrb[0].mxu0
      %v456 = vadd.f32 %v268, %v455
      %v457 = vpop.f32.mrb[0].mxu0
      %458 = vmatprep.mubr.bf16.mxu0 0
      %459 = vmatmul.mubr.bf16.gmra.mrb[0].mxu0 %v370
      %v460 = vpop.f32.mrb[0].mxu0
      %v461 = vadd.f32 %v268, %v460
      %v462 = vpop.f32.mrb[0].mxu0
      %v463 = vpop.f32.mrb[0].mxu0
      %v464 = vadd.f32 %v268, %v463
      %v465 = vpop.f32.mrb[0].mxu0
      %466 = vmatprep.mubr.bf16.mxu0 0
      %467 = vmatmul.mubr.bf16.gmra.mrb[0].mxu0 %v373
      %v468 = vpop.f32.mrb[0].mxu0
      %v469 = vadd.f32 %v268, %v468
      %v470 = vpop.f32.mrb[0].mxu0
      %v471 = vpop.f32.mrb[0].mxu0
      %v472 = vadd.f32 %v268, %v471
      %v473 = vpop.f32.mrb[0].mxu0
      %474 = vmatprep.mubr.bf16.mxu0 0
      %475 = vmatmul.mubr.bf16.gmra.mrb[0].mxu0 %v376
      %v476 = vpop.f32.mrb[0].mxu0
      %v477 = vadd.f32 %v268, %v476
      %v478 = vpop.f32.mrb[0].mxu0
      %v479 = vpop.f32.mrb[0].mxu0
      %v480 = vadd.f32 %v268, %v479
      %v481 = vpop.f32.mrb[0].mxu0
      %482 = vmatprep.mubr.bf16.mxu0 0
      %483 = vmatmul.mubr.bf16.gmra.mrb[0].mxu0 %v379
      %v484 = vpop.f32.mrb[0].mxu0
      %v485 = vadd.f32 %v268, %v484
      %v486 = vpop.f32.mrb[0].mxu0
      %v487 = vpop.f32.mrb[0].mxu0
      %v488 = vadd.f32 %v268, %v487
      %v489 = vpop.f32.mrb[0].mxu0
      %490 = vmatprep.mubr.bf16.mxu0 0
      %491 = vmatmul.mubr.bf16.gmra.mrb[0].mxu0 %v382
      %v492 = vpop.f32.mrb[0].mxu0
      %v493 = vadd.f32 %v268, %v492
      %v494 = vpop.f32.mrb[0].mxu0
      %v495 = vpop.f32.mrb[0].mxu0
      %v496 = vadd.f32 %v268, %v495
      %v497 = vpop.f32.mrb[0].mxu0
      %498 = vmatprep.mubr.bf16.mxu0 0
      %499 = vmatmul.mubr.bf16.gmra.mrb[0].mxu0 %v385
      %v500 = vpop.f32.mrb[0].mxu0
      %v501 = vadd.f32 %v268, %v500
      %v502 = vpop.f32.mrb[0].mxu0
      %v503 = vpop.f32.mrb[0].mxu0
      %v504 = vadd.f32 %v268, %v503
      %v505 = vpop.f32.mrb[0].mxu0
      %506 = vmatprep.mubr.bf16.mxu0 0
      %507 = vmatmul.mubr.bf16.gmra.mrb[0].mxu0 %v388
      %v508 = vpop.f32.mrb[0].mxu0
      %v509 = vadd.f32 %v268, %v508
      %v510 = vpop.f32.mrb[0].mxu0
      %v511 = vpop.f32.mrb[0].mxu0
      %v512 = vadd.f32 %v268, %v511
      %v513 = vpop.f32.mrb[0].mxu0
      %514 = vmatprep.mubr.bf16.mxu0 0
      %515 = vmatmul.mubr.bf16.gmra.mrb[0].mxu0 %v391
      %v516 = vpop.f32.mrb[0].mxu0
      %v517 = vadd.f32 %v268, %v516
      %v518 = vpop.f32.mrb[0].mxu0
      %v519 = vpop.f32.mrb[0].mxu0
      %v520 = vadd.f32 %v268, %v519
      %v521 = vpop.f32.mrb[0].mxu0
      %522 = vmatprep.mubr.bf16.mxu0 0
      %523 = vmatmul.mubr.bf16.gmra.mrb[0].mxu0 %v394
      %v524 = vpop.f32.mrb[0].mxu0
      %v525 = vadd.f32 %v268, %v524
      %v526 = vpop.f32.mrb[0].mxu0
      %v527 = vpop.f32.mrb[0].mxu0
      %v528 = vadd.f32 %v268, %v527
      %v529 = vpop.f32.mrb[0].mxu0
      %530 = vmatprep.mubr.bf16.mxu0 0
      %531 = vmatmul.mubr.bf16.gmra.mrb[0].mxu0 %v397
      %v532 = vpop.f32.mrb[0].mxu0
      %v533 = vadd.f32 %v268, %v532
      %v534 = vpop.f32.mrb[0].mxu0
      %v535 = vpop.f32.mrb[0].mxu0
      %v536 = vadd.f32 %v268, %v535
      %v537 = vpop.f32.mrb[0].mxu0
      %538 = vmatprep.mubr.bf16.mxu0 0
      %539 = vmatmul.mubr.bf16.gmra.mrb[0].mxu0 %v400
      %v540 = vpop.f32.mrb[0].mxu0
      %v541 = vadd.f32 %v268, %v540
      %v542 = vpop.f32.mrb[0].mxu0
      %v543 = vpop.f32.mrb[0].mxu0
      %v544 = vadd.f32 %v268, %v543
      %v545 = vpop.f32.mrb[0].mxu0
      %546 = vmatprep.mubr.bf16.mxu0 0
      %547 = vmatmul.mubr.bf16.gmra.mrb[0].mxu0 %v403
      %v548 = vpop.f32.mrb[0].mxu0
      %v549 = vadd.f32 %v268, %v548
      %v550 = vpop.f32.mrb[0].mxu0
      %v551 = vpop.f32.mrb[0].mxu0
      %v552 = vadd.f32 %v268, %v551
      %v553 = vpop.f32.mrb[0].mxu0
      %554 = vmatprep.mubr.bf16.mxu0 0
      %555 = vmatmul.mubr.bf16.gmra.mrb[0].mxu0 %v406
      %v556 = vpop.f32.mrb[0].mxu0
      %v557 = vadd.f32 %v268, %v556
      %v558 = vpop.f32.mrb[0].mxu0
      %v559 = vpop.f32.mrb[0].mxu0
      %v560 = vadd.f32 %v268, %v559
      %v561 = vpop.f32.mrb[0].mxu0
      %562 = vmatprep.mubr.bf16.mxu0 0
      %563 = vmatmul.mubr.bf16.gmra.mrb[0].mxu0 %v409
      %v564 = vpop.f32.mrb[0].mxu0
      %v565 = vadd.f32 %v268, %v564
      %v566 = vpop.f32.mrb[0].mxu0
      %v567 = vpop.f32.mrb[0].mxu0
      %v568 = vadd.f32 %v268, %v567
      %v569 = vpop.f32.mrb[0].mxu0
      %570 = vmatprep.mubr.bf16.mxu0 0
      %571 = vmatmul.mubr.bf16.gmra.mrb[0].mxu0 %v412
      %v572 = vpop.f32.mrb[0].mxu0
      %v573 = vadd.f32 %v268, %v572
      %v574 = vpop.f32.mrb[0].mxu0
      %v575 = vpop.f32.mrb[0].mxu0
      %v576 = vadd.f32 %v268, %v575
      %v577 = vpop.f32.mrb[0].mxu0
      %578 = vdwg.mxu0
      %v579 = vmax.f32 %v453, 0.0
      %v580 = vmax.f32 %v456, 0.0
      %v581 = vmax.f32 %v461, 0.0
      %v582 = vmax.f32 %v464, 0.0
      %v583 = vmax.f32 %v469, 0.0
      %v584 = vmax.f32 %v472, 0.0
      %v585 = vmax.f32 %v477, 0.0
      %v586 = vmax.f32 %v480, 0.0
      %v587 = vmax.f32 %v485, 0.0
      %v588 = vmax.f32 %v488, 0.0
      %v589 = vmax.f32 %v493, 0.0
      %v590 = vmax.f32 %v496, 0.0
      %v591 = vmax.f32 %v501, 0.0
      %v592 = vmax.f32 %v504, 0.0
      %v593 = vmax.f32 %v509, 0.0
      %v594 = vmax.f32 %v512, 0.0
      %v595 = vmax.f32 %v517, 0.0
      %v596 = vmax.f32 %v520, 0.0
      %v597 = vmax.f32 %v525, 0.0
      %v598 = vmax.f32 %v528, 0.0
      %v599 = vmax.f32 %v533, 0.0
      %v600 = vmax.f32 %v536, 0.0
      %v601 = vmax.f32 %v541, 0.0
      %v602 = vmax.f32 %v544, 0.0
      %v603 = vmax.f32 %v549, 0.0
      %v604 = vmax.f32 %v552, 0.0
      %v605 = vmax.f32 %v557, 0.0
      %v606 = vmax.f32 %v560, 0.0
      %v607 = vmax.f32 %v565, 0.0
      %v608 = vmax.f32 %v568, 0.0
      %v609 = vmax.f32 %v573, 0.0
      %v610 = vmax.f32 %v576, 0.0
      %v611 = vadd.f32 %v579, %v580
      %v612 = vadd.f32 %v611, %v581
      %v613 = vadd.f32 %v612, %v582
      %v614 = vadd.f32 %v613, %v583
      %v615 = vadd.f32 %v614, %v584
      %v616 = vadd.f32 %v615, %v585
      %v617 = vadd.f32 %v616, %v586
      %v618 = vadd.f32 %v617, %v587
      %v619 = vadd.f32 %v618, %v588
      %v620 = vadd.f32 %v619, %v589
      %v621 = vadd.f32 %v620, %v590
      %v622 = vadd.f32 %v621, %v591
      %v623 = vadd.f32 %v622, %v592
      %v624 = vadd.f32 %v623, %v593
      %v625 = vadd.f32 %v624, %v594
      %v626 = vadd.f32 %v625, %v595
      %v627 = vadd.f32 %v626, %v596
      %v628 = vadd.f32 %v627, %v597
      %v629 = vadd.f32 %v628, %v598
      %v630 = vadd.f32 %v629, %v599
      %v631 = vadd.f32 %v630, %v600
      %v632 = vadd.f32 %v631, %v601
      %v633 = vadd.f32 %v632, %v602
      %v634 = vadd.f32 %v633, %v603
      %v635 = vadd.f32 %v634, %v604
      %v636 = vadd.f32 %v635, %v605
      %v637 = vadd.f32 %v636, %v606
      %v638 = vadd.f32 %v637, %v607
      %v639 = vadd.f32 %v638, %v608
      %v640 = vadd.f32 %v639, %v609
      %v641 = vadd.f32 %v640, %v610
      %v642 = vrot.slane %v641, 4
      %v643 = vadd.f32 %v641, %v642
      %v644 = vrot.slane %v643, 2
      %v645 = vadd.f32 %v643, %v644
      %v646 = vrot.slane %v645, 1
      %v647 = vadd.f32 %v645, %v646
      %v648 = vrcp.pop 256.0
      %v649 = vmul.f32 %v647, %v648
      %v650 = vpack.c.bf16 %v649, %v649
      %v651 = vld [vmem:[%s3] sm:$0xf]
      %v652 = vld [vmem:[%s3 + $0x4] sm:$0xf]
      %v653 = vld [vmem:[%s3 + $0x8] sm:$0xf]
      %v654 = vld [vmem:[%s3 + $0xc] sm:$0xf]
      %v655 = vld [vmem:[%s3 + $0x10] sm:$0xf]
      %v656 = vld [vmem:[%s3 + $0x14] sm:$0xf]
      %v657 = vld [vmem:[%s3 + $0x18] sm:$0xf]
      %v658 = vld [vmem:[%s3 + $0x1c] sm:$0xf]
      %v659 = vld [vmem:[%s3 + $0x20] sm:$0xf]
      %v660 = vld [vmem:[%s3 + $0x24] sm:$0xf]
      %v661 = vld [vmem:[%s3 + $0x28] sm:$0xf]
      %v662 = vld [vmem:[%s3 + $0x2c] sm:$0xf]
      %v663 = vld [vmem:[%s3 + $0x30] sm:$0xf]
      %v664 = vld [vmem:[%s3 + $0x34] sm:$0xf]
      %v665 = vld [vmem:[%s3 + $0x38] sm:$0xf]
      %v666 = vld [vmem:[%s3 + $0x3c] sm:$0xf]
      %v667 = vld [vmem:[%s4] sm:$0x1]
      %v669 = vlaneseq
      %v670 = vshrl.u32 %v669, 7
      %v671 = vsub.s32 0, %v670
      %v672 = vrot.slane %v667, %v671
      %v690 = vunpack.c.l.b16 %v651
      %v691 = vunpack.c.l.b16 %v652
      %v692 = vunpack.c.l.b16 %v653
      %v693 = vunpack.c.l.b16 %v654
      %v694 = vunpack.c.l.b16 %v655
      %v695 = vunpack.c.l.b16 %v656
      %v696 = vunpack.c.l.b16 %v657
      %v697 = vunpack.c.l.b16 %v658
      %v698 = vunpack.c.l.b16 %v659
      %v699 = vunpack.c.l.b16 %v660
      %v700 = vunpack.c.l.b16 %v661
      %v701 = vunpack.c.l.b16 %v662
      %v702 = vunpack.c.l.b16 %v663
      %v703 = vunpack.c.l.b16 %v664
      %v704 = vunpack.c.l.b16 %v665
      %v705 = vunpack.c.l.b16 %v666
      %v706 = vpack.c.b16 %v691, %v690
      %v707 = vpack.c.b16 %v693, %v692
      %v708 = vpack.c.b16 %v695, %v694
      %v709 = vpack.c.b16 %v697, %v696
      %v710 = vpack.c.b16 %v699, %v698
      %v711 = vpack.c.b16 %v701, %v700
      %v712 = vpack.c.b16 %v703, %v702
      %v713 = vpack.c.b16 %v705, %v704
      %722 = vmatprep.subr.bf16.mxu0 0
      %723 = vmatpush1.bf16.msra.mxu0 %v706
      %724 = vmatprep.subr.bf16.mxu0 0
      %725 = vmatpush1.bf16.msra.mxu0 %v707
      %726 = vmatprep.subr.bf16.mxu0 0
      %727 = vmatpush1.bf16.msra.mxu0 %v708
      %728 = vmatprep.subr.bf16.mxu0 0
      %729 = vmatpush1.bf16.msra.mxu0 %v709
      %730 = vmatprep.subr.bf16.mxu0 0
      %731 = vmatpush1.bf16.msra.mxu0 %v710
      %732 = vmatprep.subr.bf16.mxu0 0
      %733 = vmatpush1.bf16.msra.mxu0 %v711
      %734 = vmatprep.subr.bf16.mxu0 0
      %735 = vmatpush1.bf16.msra.mxu0 %v712
      %736 = vmatprep.subr.bf16.mxu0 0
      %737 = vmatpush1.bf16.msra.mxu0 %v713
      %738 = vmatprep.subr.bf16.mxu0 0
      %739 = vmatpush1.bf16.msra.mxu0 0
      %740 = vmatprep.subr.bf16.mxu0 0
      %741 = vmatpush1.bf16.msra.mxu0 0
      %742 = vmatprep.subr.bf16.mxu0 0
      %743 = vmatpush1.bf16.msra.mxu0 0
      %744 = vmatprep.subr.bf16.mxu0 0
      %745 = vmatpush1.bf16.msra.mxu0 0
      %746 = vmatprep.subr.bf16.mxu0 0
      %747 = vmatpush1.bf16.msra.mxu0 0
      %748 = vmatprep.subr.bf16.mxu0 0
      %749 = vmatpush1.bf16.msra.mxu0 0
      %750 = vmatprep.subr.bf16.mxu0 0
      %751 = vmatpush1.bf16.msra.mxu0 0
      %752 = vmatprep.subr.bf16.mxu0 0
      %753 = vmatpush1.bf16.msra.mxu0 0
      %754 = vmatprep.mubr.bf16.mxu0 0
      %755 = vmatmul.mubr.bf16.gmra.mrb[0].mxu0 %v650
      %v756 = vpop.f32.mrb[0].mxu0
      %v757 = vadd.f32 %v672, %v756
      %v758 = vpop.f32.mrb[0].mxu0
      %v759 = vpop.f32.mrb[0].mxu0
      %v760 = vpop.f32.mrb[0].mxu0
      %761 = vdwg.mxu0
      %762 = vst [vmem:[%s224] sm:$0xff] %v757
      %p763 = scmp.lt.s32.totalorder %s16, 1
      %s764 = scalar_select %p763, %s16, 1
      %s765 = smul.addr %s764, 8
      %s766 = scalar_lea.vmem %s5, %s765
      // Predicated region
      $region41: #{timm_model_forward.1} parent=39 // pred_check
        %p767 = pneg %p144
      $region42: #{timm_model_forward.1} parent=39 // pred_check_branch
        %769 = sbr.rel (%p767) target = $region44
      $region43: #{timm_model_forward.1} parent=39 // pred_region
        _
      $region44: #{timm_model_forward.1} parent=39 // pred_fallthru
        _
    $region40: #{timm_model_forward.1} parent=5 // pred_fallthru
      _
    %p770 = scmp.le.s32.totalorder 2, %s11
    // Predicated region
    $region45: #{timm_model_forward.1} parent=5 // pred_check
      %p771 = pneg %p770
    $region46: #{timm_model_forward.1} parent=5 // pred_check_branch
      %773 = sbr.rel (%p771) target = $region48
    $region47: #{timm_model_forward.1} parent=5 // pred_region
      %s774 = ssub.s32 %s11, 2
      // Predicated region
      $region49: #{timm_model_forward.1} parent=47 // pred_check
        %p775 = pneg %p150
      $region50: #{timm_model_forward.1} parent=47 // pred_check_branch
        %777 = sbr.rel (%p775) target = $region52
      $region51: #{timm_model_forward.1} parent=47 // pred_region
        %p778 = scmp.lt.s32.totalorder %s17, 1
        %s779 = scalar_select %p778, %s17, 1
        %s780 = smul.addr %s779, 8
        %s781 = scalar_lea.vmem %s5, %s780
      $region52: #{timm_model_forward.1} parent=47 // pred_fallthru
        _
    $region48: #{timm_model_forward.1} parent=5 // pred_fallthru
      _
  $region6: #{timm_model_forward.1} parent=0 // loop_footer
    %s15 = sadd.s32 1, %s11
  $region7: #{timm_model_forward.1} parent=0 // loop_footer_branch
    %10 = sbr.rel target = $region3
  $region8: #{timm_model_forward.1} parent=0 // loop_exit
    _

</llo_original>
